<compile_context>
chip_gen: v7x
topology: tpu7x:2x2x1
jax: 0.10.0
libtpu: 0.0.40
codegen_flags: <defaults>
</compile_context>

<pallas_src>
import functools

import jax
import jax.numpy as jnp
from jax.experimental import pallas as pl
from jax.experimental.pallas import tpu as pltpu

_BN_EPS = 1e-5


def _round_up(x, m):
    return (x + m - 1) // m * m


def _cdiv(a, b):
    return (a + b - 1) // b


def _vmem_capacity_bytes():
    try:
        info = pltpu.get_tpu_info()
        cap = getattr(info, "vmem_capacity_bytes", None)
        if cap:
            return int(cap)
    except Exception:
        pass
    return 64 << 20  # conservative fallback (v7x per-core VMEM)


# ---------------------------------------------------------------------------
# Pallas kernel: per-tap matmuls on a row tile + folded BN + activation
# ---------------------------------------------------------------------------
def _conv_bn_act_kernel(x_ref, w_ref, scale_ref, bias_ref, o_ref, *acc_refs,
                        kh_n, kw_n, wpe, m_rows, act):
    """One grid step = (one (image, row-tile), one Cout tile, one K tile).

    x_ref    : (1, (T+halo)*WPE, tile_k)      bf16  flattened input row tile
    w_ref    : (kh_n*kw_n, tile_k, tile_cout) bf16
    scale_ref: (1, tile_cout)                 f32   folded BN scale
    bias_ref : (1, tile_cout)                 f32   folded BN bias
    o_ref    : (1, T*WPE, tile_cout)          out dtype (bf16 by default)
    acc_refs : optional (T*WPE, tile_cout) f32 scratch, only when the K
               reduction spans more than one grid step.
    """
    part = None
    for kh in range(kh_n):
        for kw in range(kw_n):
            window = x_ref[0, pl.ds(kh * wpe + kw, m_rows), :]      # (M, tk)
            tap = jnp.dot(window, w_ref[kh * kw_n + kw],
                          preferred_element_type=jnp.float32)       # (M, tco)
            part = tap if part is None else part + tap

    def _epilogue(y):
        y = y * scale_ref[...] + bias_ref[...]
        if act == "relu":
            y = jnp.maximum(y, 0.0)
        else:  # swish
            y = y * jax.nn.sigmoid(y)
        return y.astype(o_ref.dtype)

    if not acc_refs:
        # Single K tile: no scratch, no VMEM accumulator round trip.
        o_ref[0] = _epilogue(part)
    else:
        (acc_ref,) = acc_refs
        k = pl.program_id(2)

        @pl.when(k == 0)
        def _():
            acc_ref[...] = part          # set, not zero-init + add

        @pl.when(k > 0)
        def _():
            acc_ref[...] += part

        @pl.when(k == pl.num_programs(2) - 1)
        def _():
            o_ref[0] = _epilogue(acc_ref[...])


# ---------------------------------------------------------------------------
# Wrapper: path selection, layout prep, BN folding, tile sizing, pallas_call
# ---------------------------------------------------------------------------
def conv_bn_act(x_nchw, conv_w, gamma, beta, running_mean, running_var, *,
                stride=1, padding=1, act="relu", eps=_BN_EPS,
                out_dtype=jnp.bfloat16, max_rows_per_tile=None):
    """Forward of ConvBNAct.  x_nchw: (N, Cin, H, W); conv_w: (Cout, Cin, KH, KW)."""
    if act not in ("relu", "swish"):
        raise ValueError(f"unsupported act: {act}")

    N, Cin, H, W = x_nchw.shape
    Cout, cin_w, KH, KW = conv_w.shape
    assert cin_w == Cin, (cin_w, Cin)
    s, p = int(stride), int(padding)

    OH = (H + 2 * p - KH) // s + 1        # strided output height
    OW = (W + 2 * p - KW) // s + 1        # strided output width
    OH1 = H + 2 * p - KH + 1              # stride-1 output height
    OW1 = W + 2 * p - KW + 1              # stride-1 output width

    # ---- tap-stacking path selection (MXU contraction-depth utilisation) ----
    if KH * KW == 1 or Cin * KH * KW <= 384:
        path = "full"                      # all taps folded into K; native stride
        kh_n, kw_n = 1, 1
        K = Cin * KH * KW
        WPE = _round_up(max(OW, 1), 8)
        R_out = OH
        rows_extra = 0
    elif Cin < 128 and KW > 1:
        path = "kw"                        # KW taps folded; columns natively strided
        kh_n, kw_n = KH, 1
        K = Cin * KW
        WPE = _round_up(max(OW, 1), 8)
        R_out = OH1                        # stride-1 rows, subsampled in the wrapper
        rows_extra = KH - 1
    else:
        path = "none"                      # shifted-window conv, K = Cin (tiled)
        kh_n, kw_n = KH, KW
        K = Cin
        WPE = _round_up(W + 2 * p, 8)      # >= OW1 + KW - 1, so wraps land in garbage cols
        R_out = OH1
        rows_extra = KH - 1 + (1 if KW > 1 else 0)
    taps = kh_n * kw_n

    Cout_p = _round_up(Cout, 128)          # lane-dense output / weight minor dim
    K8 = _round_up(K, 8)
    if K8 <= 512:
        K_hbm, tile_k, n_k = K8, K8, 1
    else:
        K_hbm = _round_up(K, 128)
        tile_k = 256 if K_hbm % 256 == 0 else 128   # prefer full MXU depth (v6e/v7x)
        n_k = K_hbm // tile_k

    # ---- tile sizing against the real chip VMEM -----------------------------
    vmem_cap = _vmem_capacity_bytes()
    budget = int(vmem_cap * 0.72)          # per-step working set incl. double buffers
    ceiling = int(vmem_cap * 0.78)         # never request the whole chip
    out_bytes = jnp.dtype(out_dtype).itemsize
    klanes = _round_up(tile_k, 128)        # conservative VMEM lane padding estimate

    def _fp(rows_t, tco):
        xb = 4 * (rows_t + rows_extra) * WPE * klanes          # bf16, 2 buffers
        wb = 4 * taps * tile_k * tco                           # bf16, 2 buffers
        ob = 2 * out_bytes * rows_t * WPE * tco                # 2 buffers
        ab = 4 * rows_t * WPE * tco if n_k > 1 else 0          # f32 acc scratch
        return xb + wb + ob + ab + 16 * tco + (2 << 20)

    cout_cands = sorted({c for c in (128, 256, 512, Cout_p)
                         if c <= Cout_p and Cout_p % c == 0}, reverse=True)
    tile_cout, T = cout_cands[-1], 1
    for tco in cout_cands:                 # largest tile_cout first: weights resident,
        per_row = WPE * (4 * klanes        # x block not re-read per cout tile
                         + 2 * out_bytes * tco
                         + (4 * tco if n_k > 1 else 0))
        t = max(1, min(R_out, (budget - _fp(0, tco)) // per_row))
        if t >= min(R_out, 32):
            tile_cout, T = tco, int(t)
            break
        if int(t) > T:
            tile_cout, T = tco, int(t)
    n_cout = Cout_p // tile_cout

    if max_rows_per_tile is not None:
        T = max(1, min(T, int(max_rows_per_tile)))
    # Megacore (v7x has 2 TCs): guarantee >= 2 "parallel" grid blocks.
    if N * n_cout * _cdiv(R_out, T) < 2 and R_out >= 2:
        T = _cdiv(R_out, 2)
    # Keep flattened second-minor dims 16-aligned for 16-bit output tiles.
    if out_bytes == 2 and WPE % 16 != 0 and T % 2 == 1:
        T += 1
    n_r = _cdiv(R_out, T)
    NB = N * n_r
    M_t = T * WPE
    RIN = T + rows_extra

    # ---- layout prep (NCHW -> padded NHWC, tap stacking, row blocking) -------
    x = jnp.transpose(x_nchw, (0, 2, 3, 1)).astype(jnp.float32)   # NHWC
    if path == "full":
        xp = jnp.pad(x, ((0, 0), (p, p), (p, p), (0, 0)))
        slabs = [xp[:, kh:kh + OH * s:s, kw:kw + OW * s:s, :]
                 for kh in range(KH) for kw in range(KW)]
        x_rows = jnp.concatenate(slabs, axis=-1)                  # (N, OH, OW, K)
    elif path == "kw":
        xp = jnp.pad(x, ((0, 0), (p, p), (p, p), (0, 0)))
        slabs = [xp[:, :, kw:kw + OW * s:s, :] for kw in range(KW)]
        x_rows = jnp.concatenate(slabs, axis=-1)                  # (N, H+2p, OW, K)
    else:
        x_rows = jnp.pad(x, ((0, 0), (p, 0), (p, WPE - W - p), (0, 0)))

    R_in_need = n_r * T + rows_extra
    x_rows = x_rows[:, :R_in_need]
    x_rows = jnp.pad(x_rows, ((0, 0),
                              (0, max(0, R_in_need - x_rows.shape[1])),
                              (0, WPE - x_rows.shape[2]),
                              (0, K_hbm - x_rows.shape[3])))
    x_rows = x_rows.astype(jnp.bfloat16)
    if rows_extra == 0:
        x_blk = x_rows.reshape(NB, M_t, K_hbm)
    else:
        # Materialise the row halo host-side -> non-overlapping blocks, so the
        # x BlockSpec stays a plain blocked index map (no manual DMA needed).
        x_blk = jnp.stack([x_rows[:, r * T:r * T + RIN] for r in range(n_r)],
                          axis=1).reshape(NB, RIN * WPE, K_hbm)

    # Conv weights -> (taps, K_hbm, Cout_p), bf16, zero-padded, K order matches x.
    w4 = jnp.transpose(conv_w, (2, 3, 1, 0)).astype(jnp.float32)  # (KH,KW,Cin,Cout)
    if path == "full":
        wk = w4.reshape(1, KH * KW * Cin, Cout)
    elif path == "kw":
        wk = w4.reshape(KH, KW * Cin, Cout)
    else:
        wk = w4.reshape(KH * KW, Cin, Cout)
    wk = jnp.pad(wk, ((0, 0), (0, K_hbm - K), (0, Cout_p - Cout))).astype(jnp.bfloat16)

    # Fold BN (inference running stats) into per-channel scale/bias (f32 epilogue).
    inv_std = 1.0 / jnp.sqrt(running_var.astype(jnp.float32) + eps)
    scale = gamma.astype(jnp.float32) * inv_std
    bias = beta.astype(jnp.float32) - running_mean.astype(jnp.float32) * scale
    scale = jnp.pad(scale, (0, Cout_p - Cout)).reshape(1, Cout_p)
    bias = jnp.pad(bias, (0, Cout_p - Cout)).reshape(1, Cout_p)

    kernel = functools.partial(_conv_bn_act_kernel, kh_n=kh_n, kw_n=kw_n,
                               wpe=WPE, m_rows=M_t, act=act)

    flops = 2 * NB * n_cout * n_k * taps * M_t * tile_k * tile_cout
    transc = NB * M_t * Cout_p if act == "swish" else 0
    bytes_acc = (NB * n_cout * n_k * (RIN * WPE * tile_k * 2
                                      + taps * tile_k * tile_cout * 2)
                 + NB * M_t * Cout_p * out_bytes + 2 * Cout_p * 4)
    vmem_limit = int(min(ceiling, max(32 << 20, int(_fp(T, tile_cout) * 1.2))))
    scratch = [pltpu.VMEM((M_t, tile_cout), jnp.float32)] if n_k > 1 else []

    out = pl.pallas_call(
        kernel,
        out_shape=jax.ShapeDtypeStruct((NB, M_t, Cout_p), out_dtype),
        grid=(NB, n_cout, n_k),
        in_specs=[
            pl.BlockSpec((1, RIN * WPE, tile_k), lambda b, j, k: (b, 0, k)),
            pl.BlockSpec((taps, tile_k, tile_cout), lambda b, j, k: (0, k, j)),
            pl.BlockSpec((1, tile_cout), lambda b, j, k: (0, j)),
            pl.BlockSpec((1, tile_cout), lambda b, j, k: (0, j)),
        ],
        out_specs=pl.BlockSpec((1, M_t, tile_cout), lambda b, j, k: (b, 0, j)),
        scratch_shapes=scratch,
        compiler_params=pltpu.CompilerParams(
            dimension_semantics=("parallel", "parallel", "arbitrary"),
            vmem_limit_bytes=vmem_limit),
        cost_estimate=pl.CostEstimate(flops=int(flops),
                                      transcendentals=int(transc),
                                      bytes_accessed=int(bytes_acc)),
    )(x_blk, wk, scale, bias)

    # (NB, M_t, Cout_p) -> (N, n_r*T, WPE, Cout_p): free row-major reshape, then
    # crop padding (and subsample where stride is not already native), NCHW out.
    out = out.reshape(N, n_r * T, WPE, Cout_p)
    if path == "full":
        out = out[:, :OH, :OW, :Cout]
    elif path == "kw":
        out = out[:, :OH1:s, :OW, :Cout]          # rows subsampled, cols native
    else:
        out = out[:, :OH1:s, :OW1:s, :Cout]       # stride handled by subsample
    return jnp.transpose(out, (0, 3, 1, 2))


# ---------------------------------------------------------------------------
# Reference (pure JAX) using the same bf16-rounded inputs
# ---------------------------------------------------------------------------
def _reference(x_nchw, conv_w, gamma, beta, running_mean, running_var, *,
               stride=1, padding=1, act="relu", eps=_BN_EPS):
    xq = x_nchw.astype(jnp.bfloat16).astype(jnp.float32)
    wq = conv_w.astype(jnp.bfloat16).astype(jnp.float32)
    y = jax.lax.conv_general_dilated(
        xq, wq, window_strides=(stride, stride),
        padding=((padding, padding), (padding, padding)),
        dimension_numbers=("NCHW", "OIHW", "NCHW"),
        precision=jax.lax.Precision.HIGHEST)
    inv_std = 1.0 / jnp.sqrt(running_var + eps)
    scale = (gamma * inv_std).reshape(1, -1, 1, 1)
    bias = (beta - running_mean * gamma * inv_std).reshape(1, -1, 1, 1)
    y = y * scale + bias
    if act == "relu":
        return jnp.maximum(y, 0.0)
    return y * jax.nn.sigmoid(y)


def _run_case(name, *, N, Cin, Cout, H, W, KH=3, KW=3, stride=1, padding=1,
              act="relu", out_dtype=jnp.bfloat16, max_rows_per_tile=None,
              atol=2e-2, rtol=2e-2, key=None):
    kx, kw_, kg, kb, km, kv = jax.random.split(key, 6)
    x = jax.random.normal(kx, (N, Cin, H, W), dtype=jnp.float32)
    wscale = 1.0 / float(Cin * KH * KW) ** 0.5
    conv_w = wscale * jax.random.normal(kw_, (Cout, Cin, KH, KW), dtype=jnp.float32)
    gamma = 1.0 + 0.1 * jax.random.normal(kg, (Cout,), dtype=jnp.float32)
    beta = 0.1 * jax.random.normal(kb, (Cout,), dtype=jnp.float32)
    running_mean = 0.1 * jax.random.normal(km, (Cout,), dtype=jnp.float32)
    running_var = jnp.abs(1.0 + 0.1 * jax.random.normal(kv, (Cout,), dtype=jnp.float32))

    out = conv_bn_act(x, conv_w, gamma, beta, running_mean, running_var,
                      stride=stride, padding=padding, act=act,
                      out_dtype=out_dtype, max_rows_per_tile=max_rows_per_tile)
    out = jax.block_until_ready(out)
    ref = _reference(x, conv_w, gamma, beta, running_mean, running_var,
                     stride=stride, padding=padding, act=act)
    assert out.shape == ref.shape, (name, out.shape, ref.shape)
    out32 = out.astype(jnp.float32)
    err = float(jnp.max(jnp.abs(out32 - ref)))
    assert jnp.allclose(out32, ref, atol=atol, rtol=rtol), (name, err)


if __name__ == "__main__":
    keys = jax.random.split(jax.random.PRNGKey(0), 8)

    # Primary module-consistent shape (ConvBNAct(4, 8, act, kernel_size=3,
    # stride=1, padding=1)) — full tap-stacked path.
    _run_case("fullstack_relu_f32", N=2, Cin=4, Cout=8, H=16, W=16, act="relu",
              out_dtype=jnp.float32, atol=2e-3, rtol=2e-3, key=keys[0])
    _run_case("fullstack_swish_bf16", N=2, Cin=4, Cout=8, H=16, W=16,
              act="swish", key=keys[1])
    # Native stride + forced row tiling (n_r > 1, no halo needed).
    _run_case("fullstack_stride2_rowtile", N=2, Cin=4, Cout=8, H=16, W=16,
              act="relu", stride=2, max_rows_per_tile=4, key=keys[2])
    # KW-stacked path: halo row blocks + native column stride + row subsample.
    _run_case("kwstack_stride2", N=1, Cin=64, Cout=24, H=13, W=13, act="swish",
              stride=2, max_rows_per_tile=5, key=keys[3])
    # Large-Cin shifted-window path, single K tile (no scratch).
    _run_case("nostack_single_k", N=1, Cin=200, Cout=32, H=9, W=9, act="relu",
              key=keys[4])
    # Large-Cin shifted-window path, multi K tile (accumulator scratch + halo).
    _run_case("nostack_multi_k", N=1, Cin=520, Cout=32, H=8, W=8, act="swish",
              max_rows_per_tile=4, key=keys[5])

    print("KERNEL_OK")
</pallas_src>

<mosaic_0001>
module attributes {stable_mosaic.version = 11 : i64} {
  func.func @_conv_bn_act_kernel(%arg0: i32, %arg1: i32, %arg2: i32, %arg3: memref<1x256x40xbf16, #tpu.memory_space<vmem>>, %arg4: memref<1x40x128xbf16, #tpu.memory_space<vmem>>, %arg5: memref<1x128xf32, #tpu.memory_space<vmem>>, %arg6: memref<1x128xf32, #tpu.memory_space<vmem>>, %arg7: memref<1x256x128xf32, #tpu.memory_space<vmem>>) attributes {dimension_semantics = [#tpu.dimension_semantics<parallel>, #tpu.dimension_semantics<parallel>, #tpu.dimension_semantics<arbitrary>], iteration_bounds = array<i64: 2, 1, 1>, scalar_prefetch = 0 : i64, scratch_operands = 0 : i64, tpu.core_type = #tpu.core_type<tc>, window_params = [{transform_indices = @transform_0, window_bounds = array<i64: 1, 256, 40>}, {transform_indices = @transform_1, window_bounds = array<i64: 1, 40, 128>}, {transform_indices = @transform_2, window_bounds = array<i64: 1, 128>}, {transform_indices = @transform_3, window_bounds = array<i64: 1, 128>}, {transform_indices = @transform_4, window_bounds = array<i64: 1, 256, 128>}]} {
    %c0 = arith.constant 0 : index
    %c0_0 = arith.constant 0 : index
    %c0_1 = arith.constant 0 : index
    %0 = vector.load %arg3[%c0, %c0_0, %c0_1] : memref<1x256x40xbf16, #tpu.memory_space<vmem>>, vector<1x256x40xbf16>
    %1 = vector.shape_cast %0 : vector<1x256x40xbf16> to vector<256x40xbf16>
    %c0_2 = arith.constant 0 : index
    %c0_3 = arith.constant 0 : index
    %c0_4 = arith.constant 0 : index
    %2 = vector.load %arg4[%c0_2, %c0_3, %c0_4] : memref<1x40x128xbf16, #tpu.memory_space<vmem>>, vector<1x40x128xbf16>
    %3 = vector.shape_cast %2 : vector<1x40x128xbf16> to vector<40x128xbf16>
    %cst = arith.constant dense<0.000000e+00> : vector<256x128xf32>
    %4 = tpu.matmul %1, %3, %cst {dimension_numbers = #tpu.dot_dimension_numbers<[1], [0], [0], [1], [0, 0, 1, 1], [], []>} : vector<256x40xbf16>, vector<40x128xbf16>, vector<256x128xf32> -> vector<256x128xf32>
    %c0_5 = arith.constant 0 : index
    %c0_6 = arith.constant 0 : index
    %5 = vector.load %arg5[%c0_5, %c0_6] : memref<1x128xf32, #tpu.memory_space<vmem>>, vector<1x128xf32>
    %6 = vector.broadcast %5 : vector<1x128xf32> to vector<256x128xf32>
    %7 = arith.mulf %4, %6 : vector<256x128xf32>
    %c0_7 = arith.constant 0 : index
    %c0_8 = arith.constant 0 : index
    %8 = vector.load %arg6[%c0_7, %c0_8] : memref<1x128xf32, #tpu.memory_space<vmem>>, vector<1x128xf32>
    %9 = vector.broadcast %8 : vector<1x128xf32> to vector<256x128xf32>
    %10 = arith.addf %7, %9 : vector<256x128xf32>
    %cst_9 = arith.constant 0.000000e+00 : f32
    %11 = vector.broadcast %cst_9 : f32 to vector<256x128xf32>
    %12 = arith.maximumf %10, %11 : vector<256x128xf32>
    %c0_10 = arith.constant 0 : index
    %c0_11 = arith.constant 0 : index
    %c0_12 = arith.constant 0 : index
    %13 = vector.load %arg7[%c0_10, %c0_11, %c0_12] : memref<1x256x128xf32, #tpu.memory_space<vmem>>, vector<1x256x128xf32>
    %14 = vector.shape_cast %13 : vector<1x256x128xf32> to vector<256x128xf32>
    %15 = vector.shape_cast %12 : vector<256x128xf32> to vector<1x256x128xf32>
    tpu.vector_store %arg7[%c0_10, %c0_11, %c0_12], %15 {strides = array<i32>} : memref<1x256x128xf32, #tpu.memory_space<vmem>>, vector<1x256x128xf32>,
    return
  }
  func.func @transform_0(%arg0: i32, %arg1: i32, %arg2: i32) -> (i32, i32, i32) {
    %c0_i32 = arith.constant 0 : i32
    %c0_i32_0 = arith.constant 0 : i32
    return %arg0, %c0_i32, %arg2 : i32, i32, i32
  }
  func.func @transform_1(%arg0: i32, %arg1: i32, %arg2: i32) -> (i32, i32, i32) {
    %c0_i32 = arith.constant 0 : i32
    %c0_i32_0 = arith.constant 0 : i32
    return %c0_i32, %arg2, %arg1 : i32, i32, i32
  }
  func.func @transform_2(%arg0: i32, %arg1: i32, %arg2: i32) -> (i32, i32) {
    %c0_i32 = arith.constant 0 : i32
    %c0_i32_0 = arith.constant 0 : i32
    return %c0_i32, %arg1 : i32, i32
  }
  func.func @transform_3(%arg0: i32, %arg1: i32, %arg2: i32) -> (i32, i32) {
    %c0_i32 = arith.constant 0 : i32
    %c0_i32_0 = arith.constant 0 : i32
    return %c0_i32, %arg1 : i32, i32
  }
  func.func @transform_4(%arg0: i32, %arg1: i32, %arg2: i32) -> (i32, i32, i32) {
    %c0_i32 = arith.constant 0 : i32
    %c0_i32_0 = arith.constant 0 : i32
    return %arg0, %c0_i32, %arg1 : i32, i32, i32
  }
}

</mosaic_0001>

<llo_original>
// kernel: tpu_custom_call.1
$region0: #{tpu_custom_call.1}
  #allocation0 [shape = 'u32[]', space=smem, size = 0x4, offset = 0x4, fixed_abs, tag = 'smem constant byte address 0x4 - core index']
  #allocation1 [shape = 'u32[144,128]{1,0:T(1,128)}', space=vmem, size = 0x12000, scoped, tag = 'internal scratch']
  %s0 = inlined_call_operand.vmem [shape: bf16[2,256,40], index: 0, kind: input, shape index: {}]
  %s1 = inlined_call_operand.vmem [shape: bf16[1,40,128], index: 1, kind: input, shape index: {}]
  %s2 = inlined_call_operand.vmem [shape: f32[1,128], index: 2, kind: input, shape index: {}]
  %s3 = inlined_call_operand.vmem [shape: f32[1,128], index: 3, kind: input, shape index: {}]
  %s4 = inlined_call_operand.hbm [shape: f32[2,256,128], index: 4, kind: output, shape index: {}]
  %s5 = sld [smem:[#allocation0]]
  $region49: #{tpu_custom_call.1} parent=0
    _
  %s7 = ssub.s32 1, %s5
  %s8 = scalar_select 0, %s7, %s5
  $region1: #{tpu_custom_call.1} parent=0
    #allocation2 [shape = 'u8[262144]{0}', space=vmem, size = 0x40000, scoped, tag = 'output window, operand 0']
    #allocation3 [shape = 's32[2]{0}', space=sflag, size = 0x8, scoped, tag = 'scoped memory for tpu_custom_call.1']
    %9 = vsyncpa [#allocation3], 0
    %s10 = scalar_lea.sflag [#allocation3], 1
    %11 = vsyncpa %s10, 0
    loop: start=0, step=1, limit=4
    $region2: #{tpu_custom_call.1} parent=1 // loop_pre_header
      _
    $region3: #{tpu_custom_call.1} parent=1 // loop_header
      %s13 = sphi 0, %s17
      %p14 = scmp.ge.s32.totalorder %s13, 4
      %s20 = sphi 0, %s39
      %s21 = sphi 0, %s35
      %s22 = sphi 0, %s31
      %s23 = sphi 0, %s20
      %s24 = sphi 0, %s21
      %s25 = sphi 0, %s22
      %s26 = sphi 0, %s23
      %s27 = sphi 0, %s24
      %s28 = sphi 0, %s25
      %s44 = sphi 0, %s46
      %s47 = sphi 0, %s44
      %s48 = sphi 0, %s47
      %s64 = sphi 0, %s48
      %s72 = sphi 0, %s74
      %s75 = sphi 0, %s72
      %s76 = sphi 0, %s75
      %s92 = sphi 0, %s76
      %s98 = sphi 0, %s100
      %s101 = sphi 0, %s98
      %s102 = sphi 0, %s101
      %s118 = sphi 0, %s102
      %s124 = sphi 0, %s126
      %s127 = sphi 0, %s124
      %s128 = sphi 0, %s127
      %s144 = sphi 0, %s128
      %s152 = sphi 0, %s154
      %s155 = sphi 0, %s152
      %s156 = sphi 0, %s155
      %s172 = sphi 0, %s156
    $region4: #{tpu_custom_call.1} parent=1 // loop_header_branch
      %16 = sbr.rel (%p14) target = $region8
    $region5: #{tpu_custom_call.1} parent=1 // loop_body
      %s18 = ssub.s32 %s13, 1
      %s19 = ssub.s32 %s13, 2
      %s29 = sadd.s32 1, %s22
      %p30 = scmp.ge.s32.totalorder %s29, 1
      %s31 = scalar_select %p30, 0, %s29
      %s32 = sadd.s32 1, %s21
      %s33 = scalar_select %p30, %s32, %s21
      %p34 = scmp.ge.s32.totalorder %s33, 1
      %s35 = scalar_select %p34, 0, %s33
      %s36 = sadd.s32 1, %s20
      %s37 = scalar_select %p34, %s36, %s20
      %p38 = scmp.ge.s32.totalorder %s37, 2
      %s39 = scalar_select %p38, 0, %s37
      %s40 = ssub.s32 %s20, %s39
      %s41 = ssub.s32 %s22, %s31
      %s42 = sor.u32 %s40, %s41
      %p43 = scmp.eq.s32.totalorder %s42, 0
      %s45 = sadd.s32 %s44, 1
      %s46 = scalar_select %p43, %s44, %s45
      %p49 = pneg %p43
      %p50 = scmp.eq.s32.totalorder %s13, 1
      %p51 = por %p49, %p50
      %p52 = scmp.ne.s32.totalorder %s44, %s47
      %p53 = scmp.eq.s32.totalorder %s13, 0
      %p54 = por %p52, %p53
      %p55 = scmp.ne.s32.totalorder %s44, %s47
      %p56 = scmp.eq.s32.totalorder %s18, 1
      %p57 = por %p55, %p56
      %p58 = scmp.ne.s32.totalorder %s47, %s48
      %p59 = scmp.eq.s32.totalorder %s18, 0
      %p60 = por %p58, %p59
      %p61 = scmp.ne.s32.totalorder %s47, %s48
      %p62 = scmp.eq.s32.totalorder %s19, 1
      %p63 = por %p61, %p62
      %p65 = scmp.ne.s32.totalorder %s48, %s64
      %p66 = scmp.eq.s32.totalorder %s19, 0
      %p67 = por %p65, %p66
      %s68 = ssub.s32 %s22, %s31
      %s69 = ssub.s32 %s21, %s35
      %s70 = sor.u32 %s68, %s69
      %p71 = scmp.eq.s32.totalorder %s70, 0
      %s73 = sadd.s32 %s72, 1
      %s74 = scalar_select %p71, %s72, %s73
      %p77 = pneg %p71
      %p78 = scmp.eq.s32.totalorder %s13, 1
      %p79 = por %p77, %p78
      %p80 = scmp.ne.s32.totalorder %s72, %s75
      %p81 = scmp.eq.s32.totalorder %s13, 0
      %p82 = por %p80, %p81
      %p83 = scmp.ne.s32.totalorder %s72, %s75
      %p84 = scmp.eq.s32.totalorder %s18, 1
      %p85 = por %p83, %p84
      %p86 = scmp.ne.s32.totalorder %s75, %s76
      %p87 = scmp.eq.s32.totalorder %s18, 0
      %p88 = por %p86, %p87
      %p89 = scmp.ne.s32.totalorder %s75, %s76
      %p90 = scmp.eq.s32.totalorder %s19, 1
      %p91 = por %p89, %p90
      %p93 = scmp.ne.s32.totalorder %s76, %s92
      %p94 = scmp.eq.s32.totalorder %s19, 0
      %p95 = por %p93, %p94
      %s96 = ssub.s32 %s21, %s35
      %p97 = scmp.eq.s32.totalorder %s96, 0
      %s99 = sadd.s32 %s98, 1
      %s100 = scalar_select %p97, %s98, %s99
      %p103 = pneg %p97
      %p104 = scmp.eq.s32.totalorder %s13, 1
      %p105 = por %p103, %p104
      %p106 = scmp.ne.s32.totalorder %s98, %s101
      %p107 = scmp.eq.s32.totalorder %s13, 0
      %p108 = por %p106, %p107
      %p109 = scmp.ne.s32.totalorder %s98, %s101
      %p110 = scmp.eq.s32.totalorder %s18, 1
      %p111 = por %p109, %p110
      %p112 = scmp.ne.s32.totalorder %s101, %s102
      %p113 = scmp.eq.s32.totalorder %s18, 0
      %p114 = por %p112, %p113
      %p115 = scmp.ne.s32.totalorder %s101, %s102
      %p116 = scmp.eq.s32.totalorder %s19, 1
      %p117 = por %p115, %p116
      %p119 = scmp.ne.s32.totalorder %s102, %s118
      %p120 = scmp.eq.s32.totalorder %s19, 0
      %p121 = por %p119, %p120
      %s122 = ssub.s32 %s21, %s35
      %p123 = scmp.eq.s32.totalorder %s122, 0
      %s125 = sadd.s32 %s124, 1
      %s126 = scalar_select %p123, %s124, %s125
      %p129 = pneg %p123
      %p130 = scmp.eq.s32.totalorder %s13, 1
      %p131 = por %p129, %p130
      %p132 = scmp.ne.s32.totalorder %s124, %s127
      %p133 = scmp.eq.s32.totalorder %s13, 0
      %p134 = por %p132, %p133
      %p135 = scmp.ne.s32.totalorder %s124, %s127
      %p136 = scmp.eq.s32.totalorder %s18, 1
      %p137 = por %p135, %p136
      %p138 = scmp.ne.s32.totalorder %s127, %s128
      %p139 = scmp.eq.s32.totalorder %s18, 0
      %p140 = por %p138, %p139
      %p141 = scmp.ne.s32.totalorder %s127, %s128
      %p142 = scmp.eq.s32.totalorder %s19, 1
      %p143 = por %p141, %p142
      %p145 = scmp.ne.s32.totalorder %s128, %s144
      %p146 = scmp.eq.s32.totalorder %s19, 0
      %p147 = por %p145, %p146
      %s148 = ssub.s32 %s20, %s39
      %s149 = ssub.s32 %s21, %s35
      %s150 = sor.u32 %s148, %s149
      %p151 = scmp.eq.s32.totalorder %s150, 0
      %s153 = sadd.s32 %s152, 1
      %s154 = scalar_select %p151, %s152, %s153
      %p157 = pneg %p151
      %p158 = scmp.eq.s32.totalorder %s13, 1
      %p159 = por %p157, %p158
      %p160 = scmp.ne.s32.totalorder %s152, %s155
      %p161 = scmp.eq.s32.totalorder %s13, 0
      %p162 = por %p160, %p161
      %p163 = scmp.ne.s32.totalorder %s152, %s155
      %p164 = scmp.eq.s32.totalorder %s18, 1
      %p165 = por %p163, %p164
      %p166 = scmp.ne.s32.totalorder %s155, %s156
      %p167 = scmp.eq.s32.totalorder %s18, 0
      %p168 = por %p166, %p167
      %p169 = scmp.ne.s32.totalorder %s155, %s156
      %p170 = scmp.eq.s32.totalorder %s19, 1
      %p171 = por %p169, %p170
      %p173 = scmp.ne.s32.totalorder %s156, %s172
      %p174 = scmp.eq.s32.totalorder %s19, 0
      %p175 = por %p173, %p174
      %p176 = scmp.le.s32.totalorder 1, %s13
      %p177 = scmp.lt.s32.totalorder %s13, 3
      %p178 = pnand %p176, %p177
      %p179 = pneg %p178
      // Predicated region
      $region9: #{tpu_custom_call.1} parent=5 // pred_check
        _
      $region10: #{tpu_custom_call.1} parent=5 // pred_check_branch
        %181 = sbr.rel (%p178) target = $region12
      $region11: #{tpu_custom_call.1} parent=5 // pred_region
        %s182 = ssub.s32 %s13, 1
        // Predicated region
        $region13: #{tpu_custom_call.1} parent=11 // pred_check
          %p183 = pneg %p88
        $region14: #{tpu_custom_call.1} parent=11 // pred_check_branch
          %185 = sbr.rel (%p183) target = $region16
        $region15: #{tpu_custom_call.1} parent=11 // pred_region
          %s186 = smul.u32 5, %s25
          %p187 = scmp.lt.s32.totalorder %s186, 4
          %s188 = scalar_select %p187, %s186, 4
          %p189 = scmp.lt.s32.totalorder %s24, 0
          %s190 = scalar_select %p189, %s24, 0
          %s191 = sadd.s32 %s190, %s188
          %s192 = smul.addr %s191, 4
          %s193 = scalar_lea.vmem %s1, %s192
          %s194 = smul.u32 5, %s25
        $region16: #{tpu_custom_call.1} parent=11 // pred_fallthru
          _
        // Predicated region
        $region17: #{tpu_custom_call.1} parent=11 // pred_check
          %p195 = pneg %p114
        $region18: #{tpu_custom_call.1} parent=11 // pred_check_branch
          %197 = sbr.rel (%p195) target = $region20
        $region19: #{tpu_custom_call.1} parent=11 // pred_region
          %p198 = scmp.lt.s32.totalorder %s24, 0
          %s199 = scalar_select %p198, %s24, 0
          %s200 = scalar_lea.vmem %s2, %s199
        $region20: #{tpu_custom_call.1} parent=11 // pred_fallthru
          _
        // Predicated region
        $region21: #{tpu_custom_call.1} parent=11 // pred_check
          %p201 = pneg %p140
        $region22: #{tpu_custom_call.1} parent=11 // pred_check_branch
          %203 = sbr.rel (%p201) target = $region24
        $region23: #{tpu_custom_call.1} parent=11 // pred_region
          %p204 = scmp.lt.s32.totalorder %s24, 0
          %s205 = scalar_select %p204, %s24, 0
          %s206 = scalar_lea.vmem %s3, %s205
        $region24: #{tpu_custom_call.1} parent=11 // pred_fallthru
          _
      $region12: #{tpu_custom_call.1} parent=5 // pred_fallthru
        _
      %p207 = scmp.lt.s32.totalorder %s13, 2
      // Predicated region
      $region25: #{tpu_custom_call.1} parent=5 // pred_check
        %p208 = pneg %p207
      $region26: #{tpu_custom_call.1} parent=5 // pred_check_branch
        %210 = sbr.rel (%p208) target = $region28
      $region27: #{tpu_custom_call.1} parent=5 // pred_region
        // Predicated region
        $region29: #{tpu_custom_call.1} parent=27 // pred_check
          %p211 = pneg %p54
        $region30: #{tpu_custom_call.1} parent=27 // pred_check_branch
          %213 = sbr.rel (%p211) target = $region32
        $region31: #{tpu_custom_call.1} parent=27 // pred_region
          %p214 = scmp.lt.s32.totalorder %s20, 1
          %s215 = scalar_select %p214, %s20, 1
          %p216 = scmp.lt.s32.totalorder %s22, 0
          %s217 = scalar_select %p216, %s22, 0
          %s218 = smul.addr %s215, 32
          %s219 = sadd.s32 %s217, %s218
          %s220 = smul.addr %s219, 4
          %s221 = scalar_lea.vmem %s0, %s220
        $region32: #{tpu_custom_call.1} parent=27 // pred_fallthru
          _
      $region28: #{tpu_custom_call.1} parent=5 // pred_fallthru
        _
      %p222 = scmp.le.s32.totalorder 1, %s13
      %p223 = scmp.lt.s32.totalorder %s13, 3
      %p224 = pnand %p222, %p223
      %p225 = pneg %p224
      // Predicated region
      $region33: #{tpu_custom_call.1} parent=5 // pred_check
        _
      $region34: #{tpu_custom_call.1} parent=5 // pred_check_branch
        %227 = sbr.rel (%p224) target = $region36
      $region35: #{tpu_custom_call.1} parent=5 // pred_region
        %s228 = ssub.s32 %s13, 1
        %p229 = scmp.lt.s32.totalorder %s23, 1
        %s230 = scalar_select %p229, %s23, 1
        %p231 = scmp.lt.s32.totalorder %s25, 0
        %s232 = scalar_select %p231, %s25, 0
        %s233 = smul.addr %s230, 32
        %s234 = sadd.s32 %s232, %s233
        %s235 = smul.addr %s234, 4
        %s236 = scalar_lea.vmem %s0, %s235
        %p237 = pneg %p60
        %p238 = pneg %p57
        %s239 = smul.u32 5, %s25
        %p240 = scmp.lt.s32.totalorder %s239, 4
        %s241 = scalar_select %p240, %s239, 4
        %p242 = scmp.lt.s32.totalorder %s24, 0
        %s243 = scalar_select %p242, %s24, 0
        %s244 = sadd.s32 %s243, %s241
        %s245 = smul.addr %s244, 4
        %s246 = scalar_lea.vmem %s1, %s245
        %p247 = pneg %p88
        %p248 = pneg %p85
        %p249 = scmp.lt.s32.totalorder %s24, 0
        %s250 = scalar_select %p249, %s24, 0
        %s251 = scalar_lea.vmem %s2, %s250
        %p252 = pneg %p114
        %p253 = pneg %p111
        %p254 = scmp.lt.s32.totalorder %s24, 0
        %s255 = scalar_select %p254, %s24, 0
        %s256 = scalar_lea.vmem %s3, %s255
        %p257 = pneg %p140
        %p258 = pneg %p137
        %p259 = pneg %p168
        %p260 = pneg %p165
        %s261 = sand.u32 %s155, 1
        %s262 = scalar_lea.sflag [#allocation3], %s261
        %s263 = sand.u32 %s155, 1
        %s264 = smul.addr %s263, 256
        %s265 = scalar_lea.vmem [#allocation2], %s264
        %p266 = scmp.lt.s32.totalorder %s23, 1
        %s267 = scalar_select %p266, %s23, 1
        %p268 = scmp.lt.s32.totalorder %s25, 0
        %s269 = scalar_select %p268, %s25, 0
        %s270 = smul.addr %s267, 32
        %s271 = sadd.s32 %s269, %s270
        %s272 = smul.addr %s271, 4
        %s273 = scalar_lea.vmem %s0, %s272
        %s274 = smul.u32 5, %s25
        %p275 = scmp.lt.s32.totalorder %s274, 4
        %s276 = scalar_select %p275, %s274, 4
        %p277 = scmp.lt.s32.totalorder %s24, 0
        %s278 = scalar_select %p277, %s24, 0
        %s279 = sadd.s32 %s278, %s276
        %s280 = smul.addr %s279, 4
        %s281 = scalar_lea.vmem %s1, %s280
        %s282 = smul.u32 5, %s25
        %p283 = scmp.lt.s32.totalorder %s24, 0
        %s284 = scalar_select %p283, %s24, 0
        %s285 = scalar_lea.vmem %s2, %s284
        %p286 = scmp.lt.s32.totalorder %s24, 0
        %s287 = scalar_select %p286, %s24, 0
        %s288 = scalar_lea.vmem %s3, %s287
        %v290 = vld [vmem:[%s273] sm:$0xf]
        %v291 = vld [vmem:[%s273 + $0x4] sm:$0xf]
        %v292 = vld [vmem:[%s273 + $0x8] sm:$0xf]
        %v293 = vld [vmem:[%s273 + $0xc] sm:$0xf]
        %v294 = vld [vmem:[%s273 + $0x10] sm:$0xf]
        %v295 = vld [vmem:[%s273 + $0x14] sm:$0xf]
        %v296 = vld [vmem:[%s273 + $0x18] sm:$0xf]
        %v297 = vld [vmem:[%s273 + $0x1c] sm:$0xf]
        %v298 = vld [vmem:[%s273 + $0x20] sm:$0xf]
        %v299 = vld [vmem:[%s273 + $0x24] sm:$0xf]
        %v300 = vld [vmem:[%s273 + $0x28] sm:$0xf]
        %v301 = vld [vmem:[%s273 + $0x2c] sm:$0xf]
        %v302 = vld [vmem:[%s273 + $0x30] sm:$0xf]
        %v303 = vld [vmem:[%s273 + $0x34] sm:$0xf]
        %v304 = vld [vmem:[%s273 + $0x38] sm:$0xf]
        %v305 = vld [vmem:[%s273 + $0x3c] sm:$0xf]
        %v306 = vld [vmem:[%s273 + $0x40] sm:$0xf]
        %v307 = vld [vmem:[%s273 + $0x44] sm:$0xf]
        %v308 = vld [vmem:[%s273 + $0x48] sm:$0xf]
        %v309 = vld [vmem:[%s273 + $0x4c] sm:$0xf]
        %v310 = vld [vmem:[%s273 + $0x50] sm:$0xf]
        %v311 = vld [vmem:[%s273 + $0x54] sm:$0xf]
        %v312 = vld [vmem:[%s273 + $0x58] sm:$0xf]
        %v313 = vld [vmem:[%s273 + $0x5c] sm:$0xf]
        %v314 = vld [vmem:[%s273 + $0x60] sm:$0xf]
        %v315 = vld [vmem:[%s273 + $0x64] sm:$0xf]
        %v316 = vld [vmem:[%s273 + $0x68] sm:$0xf]
        %v317 = vld [vmem:[%s273 + $0x6c] sm:$0xf]
        %v318 = vld [vmem:[%s273 + $0x70] sm:$0xf]
        %v319 = vld [vmem:[%s273 + $0x74] sm:$0xf]
        %v320 = vld [vmem:[%s273 + $0x78] sm:$0xf]
        %v321 = vld [vmem:[%s273 + $0x7c] sm:$0xf]
        %v322 = vld [vmem:[%s281] sm:$0xf]
        %v323 = vld [vmem:[%s281 + $0x4] sm:$0xf]
        %v324 = vld [vmem:[%s281 + $0x8] sm:$0xf]
        %v325 = vld [vmem:[%s281 + $0xc] sm:$0xf]
        %v326 = vld [vmem:[%s281 + $0x10] sm:$0xf]
        %v359 = vunpack.c.l.b16 %v290
        %v360 = vunpack.c.l.b16 %v291
        %v361 = vunpack.c.l.b16 %v292
        %v362 = vunpack.c.l.b16 %v293
        %v363 = vunpack.c.l.b16 %v294
        %v364 = vunpack.c.l.b16 %v295
        %v365 = vunpack.c.l.b16 %v296
        %v366 = vunpack.c.l.b16 %v297
        %v367 = vunpack.c.l.b16 %v298
        %v368 = vunpack.c.l.b16 %v299
        %v369 = vunpack.c.l.b16 %v300
        %v370 = vunpack.c.l.b16 %v301
        %v371 = vunpack.c.l.b16 %v302
        %v372 = vunpack.c.l.b16 %v303
        %v373 = vunpack.c.l.b16 %v304
        %v374 = vunpack.c.l.b16 %v305
        %v375 = vunpack.c.l.b16 %v306
        %v376 = vunpack.c.l.b16 %v307
        %v377 = vunpack.c.l.b16 %v308
        %v378 = vunpack.c.l.b16 %v309
        %v379 = vunpack.c.l.b16 %v310
        %v380 = vunpack.c.l.b16 %v311
        %v381 = vunpack.c.l.b16 %v312
        %v382 = vunpack.c.l.b16 %v313
        %v383 = vunpack.c.l.b16 %v314
        %v384 = vunpack.c.l.b16 %v315
        %v385 = vunpack.c.l.b16 %v316
        %v386 = vunpack.c.l.b16 %v317
        %v387 = vunpack.c.l.b16 %v318
        %v388 = vunpack.c.l.b16 %v319
        %v389 = vunpack.c.l.b16 %v320
        %v390 = vunpack.c.l.b16 %v321
        %v391 = vpack.c.b16 %v360, %v359
        %v392 = vpack.c.b16 %v362, %v361
        %v393 = vpack.c.b16 %v364, %v363
        %v394 = vpack.c.b16 %v366, %v365
        %v395 = vpack.c.b16 %v368, %v367
        %v396 = vpack.c.b16 %v370, %v369
        %v397 = vpack.c.b16 %v372, %v371
        %v398 = vpack.c.b16 %v374, %v373
        %v399 = vpack.c.b16 %v376, %v375
        %v400 = vpack.c.b16 %v378, %v377
        %v401 = vpack.c.b16 %v380, %v379
        %v402 = vpack.c.b16 %v382, %v381
        %v403 = vpack.c.b16 %v384, %v383
        %v404 = vpack.c.b16 %v386, %v385
        %v405 = vpack.c.b16 %v388, %v387
        %v406 = vpack.c.b16 %v390, %v389
        %v412 = vunpack.c.l.b16 %v322
        %v413 = vunpack.c.l.b16 %v323
        %v414 = vunpack.c.l.b16 %v324
        %v415 = vunpack.c.l.b16 %v325
        %v416 = vunpack.c.l.b16 %v326
        %v417 = vpack.c.b16 %v413, %v412
        %v418 = vpack.c.b16 %v415, %v414
        %v419 = vpack.c.b16 %v416, %v416
        %vm422 = vcmask 326656
        %v424 = vsel %vm422, %v391, 0
        %v427 = vsel %vm422, %v392, 0
        %v430 = vsel %vm422, %v393, 0
        %v433 = vsel %vm422, %v394, 0
        %v436 = vsel %vm422, %v395, 0
        %v439 = vsel %vm422, %v396, 0
        %v442 = vsel %vm422, %v397, 0
        %v445 = vsel %vm422, %v398, 0
        %v448 = vsel %vm422, %v399, 0
        %v451 = vsel %vm422, %v400, 0
        %v454 = vsel %vm422, %v401, 0
        %v457 = vsel %vm422, %v402, 0
        %v460 = vsel %vm422, %v403, 0
        %v463 = vsel %vm422, %v404, 0
        %v466 = vsel %vm422, %v405, 0
        %v469 = vsel %vm422, %v406, 0
        %vm471 = vcmask 1043456
        %v473 = vsel %vm471, %v419, 0
        %475 = vmatprep.subr.bf16.mxu0 0
        %476 = vmatpush1.bf16.msra.mxu0 %v417
        %477 = vmatprep.subr.bf16.mxu0 0
        %478 = vmatpush1.bf16.msra.mxu0 %v418
        %479 = vmatprep.subr.bf16.mxu0 0
        %480 = vmatpush1.bf16.msra.mxu0 %v473
        %481 = vmatprep.subr.bf16.mxu0 0
        %482 = vmatpush1.bf16.msra.mxu0 0
        %483 = vmatprep.subr.bf16.mxu0 0
        %484 = vmatpush1.bf16.msra.mxu0 0
        %485 = vmatprep.subr.bf16.mxu0 0
        %486 = vmatpush1.bf16.msra.mxu0 0
        %487 = vmatprep.subr.bf16.mxu0 0
        %488 = vmatpush1.bf16.msra.mxu0 0
        %489 = vmatprep.subr.bf16.mxu0 0
        %490 = vmatpush1.bf16.msra.mxu0 0
        %491 = vmatprep.subr.bf16.mxu0 0
        %492 = vmatpush1.bf16.msra.mxu0 0
        %493 = vmatprep.subr.bf16.mxu0 0
        %494 = vmatpush1.bf16.msra.mxu0 0
        %495 = vmatprep.subr.bf16.mxu0 0
        %496 = vmatpush1.bf16.msra.mxu0 0
        %497 = vmatprep.subr.bf16.mxu0 0
        %498 = vmatpush1.bf16.msra.mxu0 0
        %499 = vmatprep.subr.bf16.mxu0 0
        %500 = vmatpush1.bf16.msra.mxu0 0
        %501 = vmatprep.subr.bf16.mxu0 0
        %502 = vmatpush1.bf16.msra.mxu0 0
        %503 = vmatprep.subr.bf16.mxu0 0
        %504 = vmatpush1.bf16.msra.mxu0 0
        %505 = vmatprep.subr.bf16.mxu0 0
        %506 = vmatpush1.bf16.msra.mxu0 0
        %507 = vmatprep.mubr.bf16.mxu0 0
        %508 = vmatmul.mubr.bf16.gmra.mrb[0].mxu0 %v424
        %v509 = vpop.f32.mrb[0].mxu0
        %v510 = vadd.f32 0.0, %v509
        %v511 = vpop.f32.mrb[0].mxu0
        %v512 = vpop.f32.mrb[0].mxu0
        %v513 = vadd.f32 0.0, %v512
        %v514 = vpop.f32.mrb[0].mxu0
        %515 = vmatprep.mubr.bf16.mxu0 0
        %516 = vmatmul.mubr.bf16.gmra.mrb[0].mxu0 %v427
        %v517 = vpop.f32.mrb[0].mxu0
        %v518 = vadd.f32 0.0, %v517
        %v519 = vpop.f32.mrb[0].mxu0
        %v520 = vpop.f32.mrb[0].mxu0
        %v521 = vadd.f32 0.0, %v520
        %v522 = vpop.f32.mrb[0].mxu0
        %523 = vmatprep.mubr.bf16.mxu0 0
        %524 = vmatmul.mubr.bf16.gmra.mrb[0].mxu0 %v430
        %v525 = vpop.f32.mrb[0].mxu0
        %v526 = vadd.f32 0.0, %v525
        %v527 = vpop.f32.mrb[0].mxu0
        %v528 = vpop.f32.mrb[0].mxu0
        %v529 = vadd.f32 0.0, %v528
        %v530 = vpop.f32.mrb[0].mxu0
        %531 = vmatprep.mubr.bf16.mxu0 0
        %532 = vmatmul.mubr.bf16.gmra.mrb[0].mxu0 %v433
        %v533 = vpop.f32.mrb[0].mxu0
        %v534 = vadd.f32 0.0, %v533
        %v535 = vpop.f32.mrb[0].mxu0
        %v536 = vpop.f32.mrb[0].mxu0
        %v537 = vadd.f32 0.0, %v536
        %v538 = vpop.f32.mrb[0].mxu0
        %539 = vmatprep.mubr.bf16.mxu0 0
        %540 = vmatmul.mubr.bf16.gmra.mrb[0].mxu0 %v436
        %v541 = vpop.f32.mrb[0].mxu0
        %v542 = vadd.f32 0.0, %v541
        %v543 = vpop.f32.mrb[0].mxu0
        %v544 = vpop.f32.mrb[0].mxu0
        %v545 = vadd.f32 0.0, %v544
        %v546 = vpop.f32.mrb[0].mxu0
        %547 = vmatprep.mubr.bf16.mxu0 0
        %548 = vmatmul.mubr.bf16.gmra.mrb[0].mxu0 %v439
        %v549 = vpop.f32.mrb[0].mxu0
        %v550 = vadd.f32 0.0, %v549
        %v551 = vpop.f32.mrb[0].mxu0
        %v552 = vpop.f32.mrb[0].mxu0
        %v553 = vadd.f32 0.0, %v552
        %v554 = vpop.f32.mrb[0].mxu0
        %555 = vmatprep.mubr.bf16.mxu0 0
        %556 = vmatmul.mubr.bf16.gmra.mrb[0].mxu0 %v442
        %v557 = vpop.f32.mrb[0].mxu0
        %v558 = vadd.f32 0.0, %v557
        %v559 = vpop.f32.mrb[0].mxu0
        %v560 = vpop.f32.mrb[0].mxu0
        %v561 = vadd.f32 0.0, %v560
        %v562 = vpop.f32.mrb[0].mxu0
        %563 = vmatprep.mubr.bf16.mxu0 0
        %564 = vmatmul.mubr.bf16.gmra.mrb[0].mxu0 %v445
        %v565 = vpop.f32.mrb[0].mxu0
        %v566 = vadd.f32 0.0, %v565
        %v567 = vpop.f32.mrb[0].mxu0
        %v568 = vpop.f32.mrb[0].mxu0
        %v569 = vadd.f32 0.0, %v568
        %v570 = vpop.f32.mrb[0].mxu0
        %571 = vmatprep.mubr.bf16.mxu0 0
        %572 = vmatmul.mubr.bf16.gmra.mrb[0].mxu0 %v448
        %v573 = vpop.f32.mrb[0].mxu0
        %v574 = vadd.f32 0.0, %v573
        %v575 = vpop.f32.mrb[0].mxu0
        %v576 = vpop.f32.mrb[0].mxu0
        %v577 = vadd.f32 0.0, %v576
        %v578 = vpop.f32.mrb[0].mxu0
        %579 = vmatprep.mubr.bf16.mxu0 0
        %580 = vmatmul.mubr.bf16.gmra.mrb[0].mxu0 %v451
        %v581 = vpop.f32.mrb[0].mxu0
        %v582 = vadd.f32 0.0, %v581
        %v583 = vpop.f32.mrb[0].mxu0
        %v584 = vpop.f32.mrb[0].mxu0
        %v585 = vadd.f32 0.0, %v584
        %v586 = vpop.f32.mrb[0].mxu0
        %587 = vmatprep.mubr.bf16.mxu0 0
        %588 = vmatmul.mubr.bf16.gmra.mrb[0].mxu0 %v454
        %v589 = vpop.f32.mrb[0].mxu0
        %v590 = vadd.f32 0.0, %v589
        %v591 = vpop.f32.mrb[0].mxu0
        %v592 = vpop.f32.mrb[0].mxu0
        %v593 = vadd.f32 0.0, %v592
        %v594 = vpop.f32.mrb[0].mxu0
        %595 = vmatprep.mubr.bf16.mxu0 0
        %596 = vmatmul.mubr.bf16.gmra.mrb[0].mxu0 %v457
        %v597 = vpop.f32.mrb[0].mxu0
        %v598 = vadd.f32 0.0, %v597
        %v599 = vpop.f32.mrb[0].mxu0
        %v600 = vpop.f32.mrb[0].mxu0
        %v601 = vadd.f32 0.0, %v600
        %v602 = vpop.f32.mrb[0].mxu0
        %603 = vmatprep.mubr.bf16.mxu0 0
        %604 = vmatmul.mubr.bf16.gmra.mrb[0].mxu0 %v460
        %v605 = vpop.f32.mrb[0].mxu0
        %v606 = vadd.f32 0.0, %v605
        %v607 = vpop.f32.mrb[0].mxu0
        %v608 = vpop.f32.mrb[0].mxu0
        %v609 = vadd.f32 0.0, %v608
        %v610 = vpop.f32.mrb[0].mxu0
        %611 = vmatprep.mubr.bf16.mxu0 0
        %612 = vmatmul.mubr.bf16.gmra.mrb[0].mxu0 %v463
        %v613 = vpop.f32.mrb[0].mxu0
        %v614 = vadd.f32 0.0, %v613
        %v615 = vpop.f32.mrb[0].mxu0
        %v616 = vpop.f32.mrb[0].mxu0
        %v617 = vadd.f32 0.0, %v616
        %v618 = vpop.f32.mrb[0].mxu0
        %619 = vmatprep.mubr.bf16.mxu0 0
        %620 = vmatmul.mubr.bf16.gmra.mrb[0].mxu0 %v466
        %v621 = vpop.f32.mrb[0].mxu0
        %v622 = vadd.f32 0.0, %v621
        %v623 = vpop.f32.mrb[0].mxu0
        %v624 = vpop.f32.mrb[0].mxu0
        %v625 = vadd.f32 0.0, %v624
        %v626 = vpop.f32.mrb[0].mxu0
        %627 = vmatprep.mubr.bf16.mxu0 0
        %628 = vmatmul.mubr.bf16.gmra.mrb[0].mxu0 %v469
        %v629 = vpop.f32.mrb[0].mxu0
        %v630 = vadd.f32 0.0, %v629
        %v631 = vpop.f32.mrb[0].mxu0
        %v632 = vpop.f32.mrb[0].mxu0
        %v633 = vadd.f32 0.0, %v632
        %v634 = vpop.f32.mrb[0].mxu0
        %635 = vdwg.mxu0
        %v636 = vld [vmem:[%s285] sm:$0x1]
        %v638 = vlaneseq
        %v639 = vshrl.u32 %v638, 7
        %v640 = vsub.s32 0, %v639
        %v641 = vrot.slane %v636, %v640
        %v643 = vmul.f32 %v510, %v641
        %v644 = vmul.f32 %v513, %v641
        %v645 = vmul.f32 %v518, %v641
        %v646 = vmul.f32 %v521, %v641
        %v647 = vmul.f32 %v526, %v641
        %v648 = vmul.f32 %v529, %v641
        %v649 = vmul.f32 %v534, %v641
        %v650 = vmul.f32 %v537, %v641
        %v651 = vmul.f32 %v542, %v641
        %v652 = vmul.f32 %v545, %v641
        %v653 = vmul.f32 %v550, %v641
        %v654 = vmul.f32 %v553, %v641
        %v655 = vmul.f32 %v558, %v641
        %v656 = vmul.f32 %v561, %v641
        %v657 = vmul.f32 %v566, %v641
        %v658 = vmul.f32 %v569, %v641
        %v659 = vmul.f32 %v574, %v641
        %v660 = vmul.f32 %v577, %v641
        %v661 = vmul.f32 %v582, %v641
        %v662 = vmul.f32 %v585, %v641
        %v663 = vmul.f32 %v590, %v641
        %v664 = vmul.f32 %v593, %v641
        %v665 = vmul.f32 %v598, %v641
        %v666 = vmul.f32 %v601, %v641
        %v667 = vmul.f32 %v606, %v641
        %v668 = vmul.f32 %v609, %v641
        %v669 = vmul.f32 %v614, %v641
        %v670 = vmul.f32 %v617, %v641
        %v671 = vmul.f32 %v622, %v641
        %v672 = vmul.f32 %v625, %v641
        %v673 = vmul.f32 %v630, %v641
        %v674 = vmul.f32 %v633, %v641
        %v675 = vld [vmem:[%s288] sm:$0x1]
        %v677 = vlaneseq
        %v678 = vshrl.u32 %v677, 7
        %v679 = vsub.s32 0, %v678
        %v680 = vrot.slane %v675, %v679
        %v682 = vadd.f32 %v643, %v680
        %v683 = vadd.f32 %v644, %v680
        %v684 = vadd.f32 %v645, %v680
        %v685 = vadd.f32 %v646, %v680
        %v686 = vadd.f32 %v647, %v680
        %v687 = vadd.f32 %v648, %v680
        %v688 = vadd.f32 %v649, %v680
        %v689 = vadd.f32 %v650, %v680
        %v690 = vadd.f32 %v651, %v680
        %v691 = vadd.f32 %v652, %v680
        %v692 = vadd.f32 %v653, %v680
        %v693 = vadd.f32 %v654, %v680
        %v694 = vadd.f32 %v655, %v680
        %v695 = vadd.f32 %v656, %v680
        %v696 = vadd.f32 %v657, %v680
        %v697 = vadd.f32 %v658, %v680
        %v698 = vadd.f32 %v659, %v680
        %v699 = vadd.f32 %v660, %v680
        %v700 = vadd.f32 %v661, %v680
        %v701 = vadd.f32 %v662, %v680
        %v702 = vadd.f32 %v663, %v680
        %v703 = vadd.f32 %v664, %v680
        %v704 = vadd.f32 %v665, %v680
        %v705 = vadd.f32 %v666, %v680
        %v706 = vadd.f32 %v667, %v680
        %v707 = vadd.f32 %v668, %v680
        %v708 = vadd.f32 %v669, %v680
        %v709 = vadd.f32 %v670, %v680
        %v710 = vadd.f32 %v671, %v680
        %v711 = vadd.f32 %v672, %v680
        %v712 = vadd.f32 %v673, %v680
        %v713 = vadd.f32 %v674, %v680
        %v714 = vmax.f32 %v682, 0.0
        %v715 = vmax.f32 %v683, 0.0
        %v716 = vmax.f32 %v684, 0.0
        %v717 = vmax.f32 %v685, 0.0
        %v718 = vmax.f32 %v686, 0.0
        %v719 = vmax.f32 %v687, 0.0
        %v720 = vmax.f32 %v688, 0.0
        %v721 = vmax.f32 %v689, 0.0
        %v722 = vmax.f32 %v690, 0.0
        %v723 = vmax.f32 %v691, 0.0
        %v724 = vmax.f32 %v692, 0.0
        %v725 = vmax.f32 %v693, 0.0
        %v726 = vmax.f32 %v694, 0.0
        %v727 = vmax.f32 %v695, 0.0
        %v728 = vmax.f32 %v696, 0.0
        %v729 = vmax.f32 %v697, 0.0
        %v730 = vmax.f32 %v698, 0.0
        %v731 = vmax.f32 %v699, 0.0
        %v732 = vmax.f32 %v700, 0.0
        %v733 = vmax.f32 %v701, 0.0
        %v734 = vmax.f32 %v702, 0.0
        %v735 = vmax.f32 %v703, 0.0
        %v736 = vmax.f32 %v704, 0.0
        %v737 = vmax.f32 %v705, 0.0
        %v738 = vmax.f32 %v706, 0.0
        %v739 = vmax.f32 %v707, 0.0
        %v740 = vmax.f32 %v708, 0.0
        %v741 = vmax.f32 %v709, 0.0
        %v742 = vmax.f32 %v710, 0.0
        %v743 = vmax.f32 %v711, 0.0
        %v744 = vmax.f32 %v712, 0.0
        %v745 = vmax.f32 %v713, 0.0
        %746 = vst [vmem:[%s265] sm:$0xff] %v714
        %747 = vst [vmem:[%s265 + $0x8] sm:$0xff] %v715
        %748 = vst [vmem:[%s265 + $0x10] sm:$0xff] %v716
        %749 = vst [vmem:[%s265 + $0x18] sm:$0xff] %v717
        %750 = vst [vmem:[%s265 + $0x20] sm:$0xff] %v718
        %751 = vst [vmem:[%s265 + $0x28] sm:$0xff] %v719
        %752 = vst [vmem:[%s265 + $0x30] sm:$0xff] %v720
        %753 = vst [vmem:[%s265 + $0x38] sm:$0xff] %v721
        %754 = vst [vmem:[%s265 + $0x40] sm:$0xff] %v722
        %755 = vst [vmem:[%s265 + $0x48] sm:$0xff] %v723
        %756 = vst [vmem:[%s265 + $0x50] sm:$0xff] %v724
        %757 = vst [vmem:[%s265 + $0x58] sm:$0xff] %v725
        %758 = vst [vmem:[%s265 + $0x60] sm:$0xff] %v726
        %759 = vst [vmem:[%s265 + $0x68] sm:$0xff] %v727
        %760 = vst [vmem:[%s265 + $0x70] sm:$0xff] %v728
        %761 = vst [vmem:[%s265 + $0x78] sm:$0xff] %v729
        %762 = vst [vmem:[%s265 + $0x80] sm:$0xff] %v730
        %763 = vst [vmem:[%s265 + $0x88] sm:$0xff] %v731
        %764 = vst [vmem:[%s265 + $0x90] sm:$0xff] %v732
        %765 = vst [vmem:[%s265 + $0x98] sm:$0xff] %v733
        %766 = vst [vmem:[%s265 + $0xa0] sm:$0xff] %v734
        %767 = vst [vmem:[%s265 + $0xa8] sm:$0xff] %v735
        %768 = vst [vmem:[%s265 + $0xb0] sm:$0xff] %v736
        %769 = vst [vmem:[%s265 + $0xb8] sm:$0xff] %v737
        %770 = vst [vmem:[%s265 + $0xc0] sm:$0xff] %v738
        %771 = vst [vmem:[%s265 + $0xc8] sm:$0xff] %v739
        %772 = vst [vmem:[%s265 + $0xd0] sm:$0xff] %v740
        %773 = vst [vmem:[%s265 + $0xd8] sm:$0xff] %v741
        %774 = vst [vmem:[%s265 + $0xe0] sm:$0xff] %v742
        %775 = vst [vmem:[%s265 + $0xe8] sm:$0xff] %v743
        %776 = vst [vmem:[%s265 + $0xf0] sm:$0xff] %v744
        %777 = vst [vmem:[%s265 + $0xf8] sm:$0xff] %v745
        %s778 = sand.u32 %s155, 1
        %s779 = scalar_lea.sflag [#allocation3], %s778
        %s780 = sand.u32 %s155, 1
        %s781 = smul.addr %s780, 256
        %s782 = scalar_lea.vmem [#allocation2], %s781
        // Predicated region
        $region37: #{tpu_custom_call.1} parent=35 // pred_check
          %p783 = pneg %p165
        $region38: #{tpu_custom_call.1} parent=35 // pred_check_branch
          %785 = sbr.rel (%p783) target = $region40
        $region39: #{tpu_custom_call.1} parent=35 // pred_region
          %s787 = ssub.s32 4096, 4096
          %788 = vsyncadd %s779, %s787
          %s789 = smul.addr %s23, 32
          %s790 = sadd.s32 %s24, %s789
          %s791 = smul.addr %s790, 128
          %s792 = scalar_lea.hbm %s4, %s791
          %s793 = sshll.u32 %s782, 4
          %s794 = int_to_ptr.vmem [resolvable:$true] %s793
          %799 = dma.vmem_to_hbm [thread:$0]  %s794, 4096, %s792, %s779, 128, 128, 8
        $region40: #{tpu_custom_call.1} parent=35 // pred_fallthru
          _
      $region36: #{tpu_custom_call.1} parent=5 // pred_fallthru
        _
      %p800 = scmp.le.s32.totalorder 2, %s13
      // Predicated region
      $region41: #{tpu_custom_call.1} parent=5 // pred_check
        %p801 = pneg %p800
      $region42: #{tpu_custom_call.1} parent=5 // pred_check_branch
        %803 = sbr.rel (%p801) target = $region44
      $region43: #{tpu_custom_call.1} parent=5 // pred_region
        %s804 = ssub.s32 %s13, 2
        // Predicated region
        $region45: #{tpu_custom_call.1} parent=43 // pred_check
          %p805 = pneg %p171
        $region46: #{tpu_custom_call.1} parent=43 // pred_check_branch
          %807 = sbr.rel (%p805) target = $region48
        $region47: #{tpu_custom_call.1} parent=43 // pred_region
          %s808 = sand.u32 %s156, 1
          %s809 = scalar_lea.sflag [#allocation3], %s808
          %s810 = sand.u32 %s156, 1
          %s811 = smul.addr %s810, 256
          %s812 = scalar_lea.vmem [#allocation2], %s811
          %813 = dma.done %s809, 4096
        $region48: #{tpu_custom_call.1} parent=43 // pred_fallthru
          _
      $region44: #{tpu_custom_call.1} parent=5 // pred_fallthru
        _
    $region6: #{tpu_custom_call.1} parent=1 // loop_footer
      %s17 = sadd.s32 1, %s13
    $region7: #{tpu_custom_call.1} parent=1 // loop_footer_branch
      %12 = sbr.rel target = $region3
    $region8: #{tpu_custom_call.1} parent=1 // loop_exit
      _
    %814 = vsyncpa [#allocation3], 1
    %s815 = scalar_lea.sflag [#allocation3], 1
    %816 = vsyncpa %s815, 1

</llo_original>
